<compile_context>
chip_gen: v6e
topology: v6e:2x2x1
jax: 0.10.0
libtpu: 0.0.40
codegen_flags: <defaults>
</compile_context>

<pallas_src>
import jax
import jax.numpy as jnp
from jax.experimental import pallas as pl
from jax.experimental.pallas import tpu as pltpu


def _round_up(x, m):
    return (x + m - 1) // m * m


def mlp_kernel(x_ref, w1_ref, b1_ref, w2_ref, b2_ref, w3_ref, b3_ref, o_ref):
    # lin1 + sigmoid (f32 throughout — v5e has no bf16 VPU/EUP, and we want 1e-5 accuracy)
    h1 = jax.nn.sigmoid(
        jnp.dot(x_ref[...], w1_ref[...], preferred_element_type=jnp.float32)
        + b1_ref[...]
    )
    # lin2 + sigmoid
    h2 = jax.nn.sigmoid(
        jnp.dot(h1, w2_ref[...], preferred_element_type=jnp.float32)
        + b2_ref[...]
    )
    # lin3 (no activation)
    o_ref[...] = (
        jnp.dot(h2, w3_ref[...], preferred_element_type=jnp.float32) + b3_ref[...]
    ).astype(o_ref.dtype)


def prepare_mlp_params(w1, b1, w2, b2, w3, b3):
    """One-time prep: transpose + zero-pad the weights/biases.

    Hoisted out of the per-call path so the 6+ pad/transpose XLA ops do not
    dominate wall-clock at small batch.  w_i are PyTorch-convention (out, in).
    Returns (padded_param_tuple, out_features).
    """
    f32 = jnp.float32
    H1, D = w1.shape
    H2 = w2.shape[0]
    O = w3.shape[0]

    Dp = _round_up(D, 8)      # K of matmul 1: sublane-align only (no 4x x-stream blowup)
    H1p = _round_up(H1, 128)  # lane (N) dims padded to 128 for lane-dense MXU/vregs
    H2p = _round_up(H2, 128)
    Op = _round_up(O, 8)      # narrow output pad -> 16x less HBM writeback than 128

    w1p = jnp.zeros((Dp, H1p), f32).at[:D, :H1].set(w1.T.astype(f32))
    w2p = jnp.zeros((H1p, H2p), f32).at[:H1, :H2].set(w2.T.astype(f32))
    w3p = jnp.zeros((H2p, Op), f32).at[:H2, :O].set(w3.T.astype(f32))
    b1p = jnp.zeros((1, H1p), f32).at[0, :H1].set(b1.astype(f32))
    b2p = jnp.zeros((1, H2p), f32).at[0, :H2].set(b2.astype(f32))
    b3p = jnp.zeros((1, Op), f32).at[0, :O].set(b3.astype(f32))

    return (w1p, b1p, w2p, b2p, w3p, b3p), O


def _pick_batch_tile(B):
    """Rows per grid step."""
    Bp8 = _round_up(B, 8)
    if Bp8 <= 64:
        # Tiny batch: one tile, zero per-step pipeline overhead.
        return Bp8
    if Bp8 <= 2048:
        # Guarantee >= 2 grid steps so both TensorCores get work on v7x
        # ("parallel" axis); harmless on 1-TC v5e/v6e.
        return _round_up(-(-Bp8 // 2), 8)
    # Large batch: big tiles (512+ rows ~ 85% of HBM roofline), still only a
    # few MiB of VMEM working set on every generation.
    return 1024


def mlp_forward(x, padded_params, out_features):
    """x: [B, F] float32. padded_params from prepare_mlp_params."""
    w1p, b1p, w2p, b2p, w3p, b3p = padded_params
    B, D = x.shape
    Dp, H1p = w1p.shape
    H2p = w2p.shape[1]
    Op = w3p.shape[1]
    f32 = jnp.float32

    bm = _pick_batch_tile(B)
    Bp = _round_up(B, bm)

    # Per-call input prep: only x (zero-pad batch rows / K columns if needed).
    if Bp == B and Dp == D:
        xp = x.astype(f32)
    else:
        xp = jnp.zeros((Bp, Dp), f32).at[:B, :D].set(x.astype(f32))

    out_p = pl.pallas_call(
        mlp_kernel,
        out_shape=jax.ShapeDtypeStruct((Bp, Op), f32),
        grid_spec=pltpu.PrefetchScalarGridSpec(
            num_scalar_prefetch=0,
            grid=(Bp // bm,),
            in_specs=[
                pl.BlockSpec((bm, Dp), lambda i: (i, 0)),    # x tile over batch
                pl.BlockSpec((Dp, H1p), lambda i: (0, 0)),   # w1^T (whole, grid-constant)
                pl.BlockSpec((1, H1p), lambda i: (0, 0)),    # b1
                pl.BlockSpec((H1p, H2p), lambda i: (0, 0)),  # w2^T
                pl.BlockSpec((1, H2p), lambda i: (0, 0)),    # b2
                pl.BlockSpec((H2p, Op), lambda i: (0, 0)),   # w3^T
                pl.BlockSpec((1, Op), lambda i: (0, 0)),     # b3
            ],
            out_specs=pl.BlockSpec((bm, Op), lambda i: (i, 0)),
        ),
        compiler_params=pltpu.CompilerParams(
            dimension_semantics=("parallel",),
            # Explicit budget (huge headroom: working set is a few MiB even at
            # bm=2048); safe on v5e (16 MiB scoped default) and v7x (64 MiB phys).
            vmem_limit_bytes=32 * 1024 * 1024,
        ),
    )(xp, w1p, b1p, w2p, b2p, w3p, b3p)

    # Strip batch/output padding outside the kernel.
    return out_p[:B, :out_features]


if __name__ == "__main__":
    # Shapes consistent with the module: input_size=32, hidden_size=[100, 10], output_size=1
    B, input_size = 16, 32
    hidden_size = [100, 10]
    output_size = 1

    key = jax.random.PRNGKey(0)
    kx, k1, k2, k3 = jax.random.split(key, 4)

    x = jax.random.normal(kx, (B, input_size), dtype=jnp.float32)

    # Deterministic init mirroring _init_weights: weights ~ N(0, 1), biases = 0.
    w1 = jax.random.normal(k1, (hidden_size[0], input_size), dtype=jnp.float32)
    b1 = jnp.zeros((hidden_size[0],), dtype=jnp.float32)
    w2 = jax.random.normal(k2, (hidden_size[1], hidden_size[0]), dtype=jnp.float32)
    b2 = jnp.zeros((hidden_size[1],), dtype=jnp.float32)
    w3 = jax.random.normal(k3, (output_size, hidden_size[1]), dtype=jnp.float32)
    b3 = jnp.zeros((output_size,), dtype=jnp.float32)

    # One-time parameter prep (hoisted out of the per-call path).
    padded_params, out_features = prepare_mlp_params(w1, b1, w2, b2, w3, b3)
    padded_params = jax.block_until_ready(padded_params)

    out = mlp_forward(x, padded_params, out_features)
    out = jax.block_until_ready(out)

    # Pure-JAX reference check of the forward-pass semantics.
    h1 = jax.nn.sigmoid(x @ w1.T + b1)
    h2 = jax.nn.sigmoid(h1 @ w2.T + b2)
    ref = h2 @ w3.T + b3
    assert out.shape == (B, output_size)
    assert jnp.allclose(out, ref, atol=1e-5, rtol=1e-5)

    print("KERNEL_OK")
</pallas_src>

<mosaic_0001>
module attributes {stable_mosaic.version = 11 : i64} {
  func.func @mlp_kernel(%arg0: i32, %arg1: memref<16x32xf32, #tpu.memory_space<vmem>>, %arg2: memref<32x128xf32, #tpu.memory_space<vmem>>, %arg3: memref<1x128xf32, #tpu.memory_space<vmem>>, %arg4: memref<128x128xf32, #tpu.memory_space<vmem>>, %arg5: memref<1x128xf32, #tpu.memory_space<vmem>>, %arg6: memref<128x8xf32, #tpu.memory_space<vmem>>, %arg7: memref<1x8xf32, #tpu.memory_space<vmem>>, %arg8: memref<16x8xf32, #tpu.memory_space<vmem>>) attributes {dimension_semantics = [#tpu.dimension_semantics<parallel>], iteration_bounds = array<i64: 1>, scalar_prefetch = 0 : i64, scratch_operands = 0 : i64, tpu.core_type = #tpu.core_type<tc>, window_params = [{transform_indices = @transform_0, window_bounds = array<i64: 16, 32>}, {pipeline_mode = #tpu.pipeline_mode<synchronous>, transform_indices = @transform_1, window_bounds = array<i64: 32, 128>}, {pipeline_mode = #tpu.pipeline_mode<synchronous>, transform_indices = @transform_2, window_bounds = array<i64: 1, 128>}, {pipeline_mode = #tpu.pipeline_mode<synchronous>, transform_indices = @transform_3, window_bounds = array<i64: 128, 128>}, {pipeline_mode = #tpu.pipeline_mode<synchronous>, transform_indices = @transform_4, window_bounds = array<i64: 1, 128>}, {pipeline_mode = #tpu.pipeline_mode<synchronous>, transform_indices = @transform_5, window_bounds = array<i64: 128, 8>}, {pipeline_mode = #tpu.pipeline_mode<synchronous>, transform_indices = @transform_6, window_bounds = array<i64: 1, 8>}, {transform_indices = @transform_7, window_bounds = array<i64: 16, 8>}]} {
    %c0 = arith.constant 0 : index
    %c0_0 = arith.constant 0 : index
    %0 = vector.load %arg1[%c0, %c0_0] : memref<16x32xf32, #tpu.memory_space<vmem>>, vector<16x32xf32>
    %c0_1 = arith.constant 0 : index
    %c0_2 = arith.constant 0 : index
    %1 = vector.load %arg2[%c0_1, %c0_2] : memref<32x128xf32, #tpu.memory_space<vmem>>, vector<32x128xf32>
    %cst = arith.constant dense<0.000000e+00> : vector<16x128xf32>
    %2 = tpu.matmul %0, %1, %cst {dimension_numbers = #tpu.dot_dimension_numbers<[1], [0], [0], [1], [0, 0, 1, 1], [], []>} : vector<16x32xf32>, vector<32x128xf32>, vector<16x128xf32> -> vector<16x128xf32>
    %c0_3 = arith.constant 0 : index
    %c0_4 = arith.constant 0 : index
    %3 = vector.load %arg3[%c0_3, %c0_4] : memref<1x128xf32, #tpu.memory_space<vmem>>, vector<1x128xf32>
    %4 = vector.broadcast %3 : vector<1x128xf32> to vector<16x128xf32>
    %5 = arith.addf %2, %4 : vector<16x128xf32>
    %6 = arith.negf %5 : vector<16x128xf32>
    %7 = math.exp %6 : vector<16x128xf32>
    %cst_5 = arith.constant 1.000000e+00 : f32
    %8 = vector.broadcast %cst_5 : f32 to vector<16x128xf32>
    %9 = arith.addf %8, %7 : vector<16x128xf32>
    %10 = arith.divf %8, %9 : vector<16x128xf32>
    %c0_6 = arith.constant 0 : index
    %c0_7 = arith.constant 0 : index
    %11 = vector.load %arg4[%c0_6, %c0_7] : memref<128x128xf32, #tpu.memory_space<vmem>>, vector<128x128xf32>
    %cst_8 = arith.constant dense<0.000000e+00> : vector<16x128xf32>
    %12 = tpu.matmul %10, %11, %cst_8 {dimension_numbers = #tpu.dot_dimension_numbers<[1], [0], [0], [1], [0, 0, 1, 1], [], []>} : vector<16x128xf32>, vector<128x128xf32>, vector<16x128xf32> -> vector<16x128xf32>
    %c0_9 = arith.constant 0 : index
    %c0_10 = arith.constant 0 : index
    %13 = vector.load %arg5[%c0_9, %c0_10] : memref<1x128xf32, #tpu.memory_space<vmem>>, vector<1x128xf32>
    %14 = vector.broadcast %13 : vector<1x128xf32> to vector<16x128xf32>
    %15 = arith.addf %12, %14 : vector<16x128xf32>
    %16 = arith.negf %15 : vector<16x128xf32>
    %17 = math.exp %16 : vector<16x128xf32>
    %cst_11 = arith.constant 1.000000e+00 : f32
    %18 = vector.broadcast %cst_11 : f32 to vector<16x128xf32>
    %19 = arith.addf %18, %17 : vector<16x128xf32>
    %20 = arith.divf %18, %19 : vector<16x128xf32>
    %c0_12 = arith.constant 0 : index
    %c0_13 = arith.constant 0 : index
    %21 = vector.load %arg6[%c0_12, %c0_13] : memref<128x8xf32, #tpu.memory_space<vmem>>, vector<128x8xf32>
    %cst_14 = arith.constant dense<0.000000e+00> : vector<16x8xf32>
    %22 = tpu.matmul %20, %21, %cst_14 {dimension_numbers = #tpu.dot_dimension_numbers<[1], [0], [0], [1], [0, 0, 1, 1], [], []>} : vector<16x128xf32>, vector<128x8xf32>, vector<16x8xf32> -> vector<16x8xf32>
    %c0_15 = arith.constant 0 : index
    %c0_16 = arith.constant 0 : index
    %23 = vector.load %arg7[%c0_15, %c0_16] : memref<1x8xf32, #tpu.memory_space<vmem>>, vector<1x8xf32>
    %24 = vector.broadcast %23 : vector<1x8xf32> to vector<16x8xf32>
    %25 = arith.addf %22, %24 : vector<16x8xf32>
    %c0_17 = arith.constant 0 : index
    %c0_18 = arith.constant 0 : index
    %26 = vector.load %arg8[%c0_17, %c0_18] : memref<16x8xf32, #tpu.memory_space<vmem>>, vector<16x8xf32>
    tpu.vector_store %arg8[%c0_17, %c0_18], %25 {strides = array<i32>} : memref<16x8xf32, #tpu.memory_space<vmem>>, vector<16x8xf32>,
    return
  }
  func.func @transform_0(%arg0: i32) -> (i32, i32) {
    %c0_i32 = arith.constant 0 : i32
    %c0_i32_0 = arith.constant 0 : i32
    return %arg0, %c0_i32 : i32, i32
  }
  func.func @transform_1(%arg0: i32) -> (i32, i32) {
    %c0_i32 = arith.constant 0 : i32
    %c0_i32_0 = arith.constant 0 : i32
    %c0_i32_1 = arith.constant 0 : i32
    return %c0_i32, %c0_i32_0 : i32, i32
  }
  func.func @transform_2(%arg0: i32) -> (i32, i32) {
    %c0_i32 = arith.constant 0 : i32
    %c0_i32_0 = arith.constant 0 : i32
    %c0_i32_1 = arith.constant 0 : i32
    return %c0_i32, %c0_i32_0 : i32, i32
  }
  func.func @transform_3(%arg0: i32) -> (i32, i32) {
    %c0_i32 = arith.constant 0 : i32
    %c0_i32_0 = arith.constant 0 : i32
    %c0_i32_1 = arith.constant 0 : i32
    return %c0_i32, %c0_i32_0 : i32, i32
  }
  func.func @transform_4(%arg0: i32) -> (i32, i32) {
    %c0_i32 = arith.constant 0 : i32
    %c0_i32_0 = arith.constant 0 : i32
    %c0_i32_1 = arith.constant 0 : i32
    return %c0_i32, %c0_i32_0 : i32, i32
  }
  func.func @transform_5(%arg0: i32) -> (i32, i32) {
    %c0_i32 = arith.constant 0 : i32
    %c0_i32_0 = arith.constant 0 : i32
    %c0_i32_1 = arith.constant 0 : i32
    return %c0_i32, %c0_i32_0 : i32, i32
  }
  func.func @transform_6(%arg0: i32) -> (i32, i32) {
    %c0_i32 = arith.constant 0 : i32
    %c0_i32_0 = arith.constant 0 : i32
    %c0_i32_1 = arith.constant 0 : i32
    return %c0_i32, %c0_i32_0 : i32, i32
  }
  func.func @transform_7(%arg0: i32) -> (i32, i32) {
    %c0_i32 = arith.constant 0 : i32
    %c0_i32_0 = arith.constant 0 : i32
    return %arg0, %c0_i32 : i32, i32
  }
}

</mosaic_0001>

<llo_original>
// kernel: tpu_custom_call.1
$region0: #{tpu_custom_call.1}
  #allocation0 [shape = 'u32[]', space=smem, size = 0x4, offset = 0x4, fixed_abs, tag = 'smem constant byte address 0x4 - core index']
  #allocation1 [shape = 'u32[144,128]{1,0:T(1,128)}', space=vmem, size = 0x12000, scoped, tag = 'internal scratch']
  %s0 = inlined_call_operand.hbm [shape: f32[16,32], index: 0, kind: input, shape index: {}]
  %s1 = inlined_call_operand.hbm [shape: f32[32,128], index: 1, kind: input, shape index: {}]
  %s2 = inlined_call_operand.vmem [shape: f32[1,128], index: 2, kind: input, shape index: {}]
  %s3 = inlined_call_operand.vmem [shape: f32[128,128], index: 3, kind: input, shape index: {}]
  %s4 = inlined_call_operand.vmem [shape: f32[1,128], index: 4, kind: input, shape index: {}]
  %s5 = inlined_call_operand.vmem [shape: f32[128,8], index: 5, kind: input, shape index: {}]
  %s6 = inlined_call_operand.vmem [shape: f32[1,8], index: 6, kind: input, shape index: {}]
  %s7 = inlined_call_operand.vmem [shape: f32[16,8], index: 7, kind: output, shape index: {}]
  %s8 = sld [smem:[#allocation0]]
  $region46: #{tpu_custom_call.1} parent=0
    _
  %s10 = ssub.s32 1, %s8
  %s11 = scalar_select 0, %s10, %s8
  $region1: #{tpu_custom_call.1} parent=0
    #allocation2 [shape = 'u8[8192]{0}', space=vmem, size = 0x2000, scoped, tag = 'input window, operand 0, single buffered']
    #allocation3 [shape = 's32[1]{0}', space=sflag, size = 0x4, scoped, tag = 'scoped memory for tpu_custom_call.1']
    #allocation4 [shape = 'u8[16384]{0}', space=vmem, size = 0x4000, scoped, tag = 'input window, operand 1, single buffered']
    #allocation5 [shape = 's32[1]{0}', space=sflag, size = 0x4, scoped, tag = 'scoped memory for tpu_custom_call.1']
    %12 = vsyncpa [#allocation3], 0
    %13 = vsyncpa [#allocation5], 0
    // Predicated region
    $region2: #{tpu_custom_call.1} parent=1 // pred_check
      _
    $region3: #{tpu_custom_call.1} parent=1 // pred_check_branch
      %15 = sbr.rel (0) target = $region5
    $region4: #{tpu_custom_call.1} parent=1 // pred_region
      %s17 = ssub.s32 256, 256
      %18 = vsyncadd [#allocation3], %s17
      %s19 = sshll.u32 [#allocation2], 4
      %s20 = int_to_ptr.vmem [resolvable:$true] %s19
      %25 = dma.hbm_to_vmem [thread:$0]  %s0, 256, %s20, [#allocation3], 128, 128, 8
    $region5: #{tpu_custom_call.1} parent=1 // pred_fallthru
      _
    // Predicated region
    $region6: #{tpu_custom_call.1} parent=1 // pred_check
      _
    $region7: #{tpu_custom_call.1} parent=1 // pred_check_branch
      %27 = sbr.rel (0) target = $region9
    $region8: #{tpu_custom_call.1} parent=1 // pred_region
      %s29 = ssub.s32 512, 512
      %30 = vsyncadd [#allocation5], %s29
      %s31 = sshll.u32 [#allocation4], 4
      %s32 = int_to_ptr.vmem [resolvable:$true] %s31
      %37 = dma.hbm_to_vmem [thread:$0]  %s1, 512, %s32, [#allocation5], 128, 128, 8
    $region9: #{tpu_custom_call.1} parent=1 // pred_fallthru
      _
    // Predicated region
    $region10: #{tpu_custom_call.1} parent=1 // pred_check
      _
    $region11: #{tpu_custom_call.1} parent=1 // pred_check_branch
      %39 = sbr.rel (0) target = $region13
    $region12: #{tpu_custom_call.1} parent=1 // pred_region
      _
    $region13: #{tpu_custom_call.1} parent=1 // pred_fallthru
      _
    // Predicated region
    $region14: #{tpu_custom_call.1} parent=1 // pred_check
      _
    $region15: #{tpu_custom_call.1} parent=1 // pred_check_branch
      %41 = sbr.rel (0) target = $region17
    $region16: #{tpu_custom_call.1} parent=1 // pred_region
      _
    $region17: #{tpu_custom_call.1} parent=1 // pred_fallthru
      _
    // Predicated region
    $region18: #{tpu_custom_call.1} parent=1 // pred_check
      _
    $region19: #{tpu_custom_call.1} parent=1 // pred_check_branch
      %43 = sbr.rel (0) target = $region21
    $region20: #{tpu_custom_call.1} parent=1 // pred_region
      _
    $region21: #{tpu_custom_call.1} parent=1 // pred_fallthru
      _
    // Predicated region
    $region22: #{tpu_custom_call.1} parent=1 // pred_check
      _
    $region23: #{tpu_custom_call.1} parent=1 // pred_check_branch
      %45 = sbr.rel (0) target = $region25
    $region24: #{tpu_custom_call.1} parent=1 // pred_region
      _
    $region25: #{tpu_custom_call.1} parent=1 // pred_fallthru
      _
    // Predicated region
    $region26: #{tpu_custom_call.1} parent=1 // pred_check
      _
    $region27: #{tpu_custom_call.1} parent=1 // pred_check_branch
      %47 = sbr.rel (0) target = $region29
    $region28: #{tpu_custom_call.1} parent=1 // pred_region
      _
    $region29: #{tpu_custom_call.1} parent=1 // pred_fallthru
      _
    // Predicated region
    $region30: #{tpu_custom_call.1} parent=1 // pred_check
      _
    $region31: #{tpu_custom_call.1} parent=1 // pred_check_branch
      %49 = sbr.rel (0) target = $region33
    $region32: #{tpu_custom_call.1} parent=1 // pred_region
      %50 = dma.done [#allocation3], 256
    $region33: #{tpu_custom_call.1} parent=1 // pred_fallthru
      _
    // Predicated region
    $region34: #{tpu_custom_call.1} parent=1 // pred_check
      _
    $region35: #{tpu_custom_call.1} parent=1 // pred_check_branch
      %52 = sbr.rel (0) target = $region37
    $region36: #{tpu_custom_call.1} parent=1 // pred_region
      %53 = dma.done [#allocation5], 512
    $region37: #{tpu_custom_call.1} parent=1 // pred_fallthru
      _
    %v54 = vld [vmem:[#allocation2] sm:$0xff]
    %v55 = vld [vmem:[#allocation2 + $0x8] sm:$0xff]
    %v56 = vld [vmem:[#allocation4] sm:$0xff]
    %v57 = vld [vmem:[#allocation4 + $0x8] sm:$0xff]
    %v58 = vld [vmem:[#allocation4 + $0x10] sm:$0xff]
    %v59 = vld [vmem:[#allocation4 + $0x18] sm:$0xff]
    %v60 = vld [vmem:[%s2] sm:$0x1]
    %v62 = vlaneseq
    %v63 = vshrl.u32 %v62, 7
    %v64 = vsub.s32 0, %v63
    %v65 = vrot.slane %v60, %v64
    %vm67 = vcmask 261120
    %v69 = vsel %vm67, %v54, 0
    %v72 = vsel %vm67, %v55, 0
    %74 = vmatprep.subr.mxu0 0.0
    %75 = vmatpush1.msra.mxu0 0.0
    %76 = vmatprep.subr.mxu0 0.0
    %77 = vmatpush1.msra.mxu0 0.0
    %78 = vmatprep.subr.mxu0 0.0
    %79 = vmatpush1.msra.mxu0 0.0
    %80 = vmatprep.subr.mxu0 0.0
    %81 = vmatpush1.msra.mxu0 0.0
    %82 = vmatprep.subr.mxu0 0.0
    %83 = vmatpush1.msra.mxu0 0.0
    %84 = vmatprep.subr.mxu0 0.0
    %85 = vmatpush1.msra.mxu0 0.0
    %86 = vmatprep.subr.mxu0 0.0
    %87 = vmatpush1.msra.mxu0 0.0
    %88 = vmatprep.subr.mxu0 0.0
    %89 = vmatpush1.msra.mxu0 0.0
    %90 = vmatprep.subr.mxu0 0.0
    %91 = vmatpush1.msra.mxu0 0.0
    %92 = vmatprep.subr.mxu0 0.0
    %93 = vmatpush1.msra.mxu0 0.0
    %94 = vmatprep.subr.mxu0 0.0
    %95 = vmatpush1.msra.mxu0 0.0
    %96 = vmatprep.subr.mxu0 0.0
    %97 = vmatpush1.msra.mxu0 0.0
    %98 = vmatprep.subr.mxu0 0.0
    %99 = vmatpush1.msra.mxu0 %v59
    %100 = vmatprep.subr.mxu0 0.0
    %101 = vmatpush1.msra.mxu0 %v58
    %102 = vmatprep.subr.mxu0 0.0
    %103 = vmatpush1.msra.mxu0 %v57
    %104 = vmatprep.subr.mxu0 0.0
    %105 = vmatpush1.msra.mxu0 %v56
    %106 = vmatprep.subr.mxu0 0.0
    %107 = vmatpush2.msra.mxu0 0.0
    %108 = vmatprep.subr.mxu0 0.0
    %109 = vmatpush2.msra.mxu0 0.0
    %110 = vmatprep.subr.mxu0 0.0
    %111 = vmatpush2.msra.mxu0 0.0
    %112 = vmatprep.subr.mxu0 0.0
    %113 = vmatpush2.msra.mxu0 0.0
    %114 = vmatprep.subr.mxu0 0.0
    %115 = vmatpush2.msra.mxu0 0.0
    %116 = vmatprep.subr.mxu0 0.0
    %117 = vmatpush2.msra.mxu0 0.0
    %118 = vmatprep.subr.mxu0 0.0
    %119 = vmatpush2.msra.mxu0 0.0
    %120 = vmatprep.subr.mxu0 0.0
    %121 = vmatpush2.msra.mxu0 0.0
    %122 = vmatprep.subr.mxu0 0.0
    %123 = vmatpush2.msra.mxu0 0.0
    %124 = vmatprep.subr.mxu0 0.0
    %125 = vmatpush2.msra.mxu0 0.0
    %126 = vmatprep.subr.mxu0 0.0
    %127 = vmatpush2.msra.mxu0 0.0
    %128 = vmatprep.subr.mxu0 0.0
    %129 = vmatpush2.msra.mxu0 0.0
    %130 = vmatprep.subr.mxu0 0.0
    %131 = vmatpush2.msra.mxu0 0.0
    %132 = vmatprep.subr.mxu0 0.0
    %133 = vmatpush2.msra.mxu0 0.0
    %134 = vmatprep.subr.mxu0 0.0
    %135 = vmatpush2.msra.mxu0 0.0
    %136 = vmatprep.subr.mxu0 0.0
    %137 = vmatpush2.msra.mxu0 0.0
    %138 = vmatprep.mubr.f32.mxu0 0.0
    %139 = vmatmul.mubr.f32.gmra.mxu0 %v69
    %v140 = vpop.f32.mrf.mxu0
    %v141 = vadd.f32 %v65, %v140
    %v142 = vpop.f32.mrf.mxu0
    %143 = vmatprep.mubr.f32.mxu0 0.0
    %144 = vmatmul.mubr.f32.gmra.mxu0 %v72
    %v145 = vpop.f32.mrf.mxu0
    %v146 = vadd.f32 %v65, %v145
    %v147 = vpop.f32.mrf.mxu0
    %148 = vdwg.mxu0
    %v149 = vxor.u32 %v141, 2147483648
    %v150 = vxor.u32 %v146, 2147483648
    %v151 = vmul.f32 %v149, 1.442695
    %v152 = vpow.pop %v151
    %v153 = vmul.f32 %v150, 1.442695
    %v154 = vpow.pop %v153
    %v155 = vadd.f32 %v152, 1.0
    %v156 = vadd.f32 %v154, 1.0
    %v157 = vrcp.pop %v155
    %v158 = vmul.f32 1.0, %v157
    %v159 = vrcp.pop %v156
    %v160 = vmul.f32 1.0, %v159
    %v161 = vld [vmem:[%s3] sm:$0xff]
    %v162 = vld [vmem:[%s3 + $0x8] sm:$0xff]
    %v163 = vld [vmem:[%s3 + $0x10] sm:$0xff]
    %v164 = vld [vmem:[%s3 + $0x18] sm:$0xff]
    %v165 = vld [vmem:[%s3 + $0x20] sm:$0xff]
    %v166 = vld [vmem:[%s3 + $0x28] sm:$0xff]
    %v167 = vld [vmem:[%s3 + $0x30] sm:$0xff]
    %v168 = vld [vmem:[%s3 + $0x38] sm:$0xff]
    %v169 = vld [vmem:[%s3 + $0x40] sm:$0xff]
    %v170 = vld [vmem:[%s3 + $0x48] sm:$0xff]
    %v171 = vld [vmem:[%s3 + $0x50] sm:$0xff]
    %v172 = vld [vmem:[%s3 + $0x58] sm:$0xff]
    %v173 = vld [vmem:[%s3 + $0x60] sm:$0xff]
    %v174 = vld [vmem:[%s3 + $0x68] sm:$0xff]
    %v175 = vld [vmem:[%s3 + $0x70] sm:$0xff]
    %v176 = vld [vmem:[%s3 + $0x78] sm:$0xff]
    %v177 = vld [vmem:[%s4] sm:$0x1]
    %v179 = vlaneseq
    %v180 = vshrl.u32 %v179, 7
    %v181 = vsub.s32 0, %v180
    %v182 = vrot.slane %v177, %v181
    %184 = vmatprep.subr.mxu0 0.0
    %185 = vmatpush1.msra.mxu0 %v176
    %186 = vmatprep.subr.mxu0 0.0
    %187 = vmatpush1.msra.mxu0 %v175
    %188 = vmatprep.subr.mxu0 0.0
    %189 = vmatpush1.msra.mxu0 %v174
    %190 = vmatprep.subr.mxu0 0.0
    %191 = vmatpush1.msra.mxu0 %v173
    %192 = vmatprep.subr.mxu0 0.0
    %193 = vmatpush1.msra.mxu0 %v172
    %194 = vmatprep.subr.mxu0 0.0
    %195 = vmatpush1.msra.mxu0 %v171
    %196 = vmatprep.subr.mxu0 0.0
    %197 = vmatpush1.msra.mxu0 %v170
    %198 = vmatprep.subr.mxu0 0.0
    %199 = vmatpush1.msra.mxu0 %v169
    %200 = vmatprep.subr.mxu0 0.0
    %201 = vmatpush1.msra.mxu0 %v168
    %202 = vmatprep.subr.mxu0 0.0
    %203 = vmatpush1.msra.mxu0 %v167
    %204 = vmatprep.subr.mxu0 0.0
    %205 = vmatpush1.msra.mxu0 %v166
    %206 = vmatprep.subr.mxu0 0.0
    %207 = vmatpush1.msra.mxu0 %v165
    %208 = vmatprep.subr.mxu0 0.0
    %209 = vmatpush1.msra.mxu0 %v164
    %210 = vmatprep.subr.mxu0 0.0
    %211 = vmatpush1.msra.mxu0 %v163
    %212 = vmatprep.subr.mxu0 0.0
    %213 = vmatpush1.msra.mxu0 %v162
    %214 = vmatprep.subr.mxu0 0.0
    %215 = vmatpush1.msra.mxu0 %v161
    %216 = vmatprep.subr.mxu0 0.0
    %217 = vmatpush2.msra.mxu0 0.0
    %218 = vmatprep.subr.mxu0 0.0
    %219 = vmatpush2.msra.mxu0 0.0
    %220 = vmatprep.subr.mxu0 0.0
    %221 = vmatpush2.msra.mxu0 0.0
    %222 = vmatprep.subr.mxu0 0.0
    %223 = vmatpush2.msra.mxu0 0.0
    %224 = vmatprep.subr.mxu0 0.0
    %225 = vmatpush2.msra.mxu0 0.0
    %226 = vmatprep.subr.mxu0 0.0
    %227 = vmatpush2.msra.mxu0 0.0
    %228 = vmatprep.subr.mxu0 0.0
    %229 = vmatpush2.msra.mxu0 0.0
    %230 = vmatprep.subr.mxu0 0.0
    %231 = vmatpush2.msra.mxu0 0.0
    %232 = vmatprep.subr.mxu0 0.0
    %233 = vmatpush2.msra.mxu0 0.0
    %234 = vmatprep.subr.mxu0 0.0
    %235 = vmatpush2.msra.mxu0 0.0
    %236 = vmatprep.subr.mxu0 0.0
    %237 = vmatpush2.msra.mxu0 0.0
    %238 = vmatprep.subr.mxu0 0.0
    %239 = vmatpush2.msra.mxu0 0.0
    %240 = vmatprep.subr.mxu0 0.0
    %241 = vmatpush2.msra.mxu0 0.0
    %242 = vmatprep.subr.mxu0 0.0
    %243 = vmatpush2.msra.mxu0 0.0
    %244 = vmatprep.subr.mxu0 0.0
    %245 = vmatpush2.msra.mxu0 0.0
    %246 = vmatprep.subr.mxu0 0.0
    %247 = vmatpush2.msra.mxu0 0.0
    %248 = vmatprep.mubr.f32.mxu0 0.0
    %249 = vmatmul.mubr.f32.gmra.mxu0 %v158
    %v250 = vpop.f32.mrf.mxu0
    %v251 = vadd.f32 %v182, %v250
    %v252 = vpop.f32.mrf.mxu0
    %253 = vmatprep.mubr.f32.mxu0 0.0
    %254 = vmatmul.mubr.f32.gmra.mxu0 %v160
    %v255 = vpop.f32.mrf.mxu0
    %v256 = vadd.f32 %v182, %v255
    %v257 = vpop.f32.mrf.mxu0
    %258 = vdwg.mxu0
    %v259 = vxor.u32 %v251, 2147483648
    %v260 = vxor.u32 %v256, 2147483648
    %v261 = vmul.f32 %v259, 1.442695
    %v262 = vpow.pop %v261
    %v263 = vmul.f32 %v260, 1.442695
    %v264 = vpow.pop %v263
    %v265 = vadd.f32 %v262, 1.0
    %v266 = vadd.f32 %v264, 1.0
    %v267 = vrcp.pop %v265
    %v268 = vmul.f32 1.0, %v267
    %v269 = vrcp.pop %v266
    %v270 = vmul.f32 1.0, %v269
    %v271 = vld [vmem:[%s5] sm:$0xff]
    %v272 = vld [vmem:[%s5 + $0x8] sm:$0xff]
    %v273 = vld [vmem:[%s5 + $0x10] sm:$0xff]
    %v274 = vld [vmem:[%s5 + $0x18] sm:$0xff]
    %v275 = vld [vmem:[%s5 + $0x20] sm:$0xff]
    %v276 = vld [vmem:[%s5 + $0x28] sm:$0xff]
    %v277 = vld [vmem:[%s5 + $0x30] sm:$0xff]
    %v278 = vld [vmem:[%s5 + $0x38] sm:$0xff]
    %v279 = vld [vmem:[%s5 + $0x40] sm:$0xff]
    %v280 = vld [vmem:[%s5 + $0x48] sm:$0xff]
    %v281 = vld [vmem:[%s5 + $0x50] sm:$0xff]
    %v282 = vld [vmem:[%s5 + $0x58] sm:$0xff]
    %v283 = vld [vmem:[%s5 + $0x60] sm:$0xff]
    %v284 = vld [vmem:[%s5 + $0x68] sm:$0xff]
    %v285 = vld [vmem:[%s5 + $0x70] sm:$0xff]
    %v286 = vld [vmem:[%s5 + $0x78] sm:$0xff]
    %v287 = vld [vmem:[%s6] sm:$0x1]
    %v289 = vlaneseq
    %v290 = vshrl.u32 %v289, 7
    %v291 = vsub.s32 0, %v290
    %v292 = vrot.slane %v287, %v291
    %294 = vmatprep.subr.mxu0 0.0
    %295 = vmatpush1.msra.mxu0 %v286
    %296 = vmatprep.subr.mxu0 0.0
    %297 = vmatpush1.msra.mxu0 %v285
    %298 = vmatprep.subr.mxu0 0.0
    %299 = vmatpush1.msra.mxu0 %v284
    %300 = vmatprep.subr.mxu0 0.0
    %301 = vmatpush1.msra.mxu0 %v283
    %302 = vmatprep.subr.mxu0 0.0
    %303 = vmatpush1.msra.mxu0 %v282
    %304 = vmatprep.subr.mxu0 0.0
    %305 = vmatpush1.msra.mxu0 %v281
    %306 = vmatprep.subr.mxu0 0.0
    %307 = vmatpush1.msra.mxu0 %v280
    %308 = vmatprep.subr.mxu0 0.0
    %309 = vmatpush1.msra.mxu0 %v279
    %310 = vmatprep.subr.mxu0 0.0
    %311 = vmatpush1.msra.mxu0 %v278
    %312 = vmatprep.subr.mxu0 0.0
    %313 = vmatpush1.msra.mxu0 %v277
    %314 = vmatprep.subr.mxu0 0.0
    %315 = vmatpush1.msra.mxu0 %v276
    %316 = vmatprep.subr.mxu0 0.0
    %317 = vmatpush1.msra.mxu0 %v275
    %318 = vmatprep.subr.mxu0 0.0
    %319 = vmatpush1.msra.mxu0 %v274
    %320 = vmatprep.subr.mxu0 0.0
    %321 = vmatpush1.msra.mxu0 %v273
    %322 = vmatprep.subr.mxu0 0.0
    %323 = vmatpush1.msra.mxu0 %v272
    %324 = vmatprep.subr.mxu0 0.0
    %325 = vmatpush1.msra.mxu0 %v271
    %326 = vmatprep.subr.mxu0 0.0
    %327 = vmatpush2.msra.mxu0 0.0
    %328 = vmatprep.subr.mxu0 0.0
    %329 = vmatpush2.msra.mxu0 0.0
    %330 = vmatprep.subr.mxu0 0.0
    %331 = vmatpush2.msra.mxu0 0.0
    %332 = vmatprep.subr.mxu0 0.0
    %333 = vmatpush2.msra.mxu0 0.0
    %334 = vmatprep.subr.mxu0 0.0
    %335 = vmatpush2.msra.mxu0 0.0
    %336 = vmatprep.subr.mxu0 0.0
    %337 = vmatpush2.msra.mxu0 0.0
    %338 = vmatprep.subr.mxu0 0.0
    %339 = vmatpush2.msra.mxu0 0.0
    %340 = vmatprep.subr.mxu0 0.0
    %341 = vmatpush2.msra.mxu0 0.0
    %342 = vmatprep.subr.mxu0 0.0
    %343 = vmatpush2.msra.mxu0 0.0
    %344 = vmatprep.subr.mxu0 0.0
    %345 = vmatpush2.msra.mxu0 0.0
    %346 = vmatprep.subr.mxu0 0.0
    %347 = vmatpush2.msra.mxu0 0.0
    %348 = vmatprep.subr.mxu0 0.0
    %349 = vmatpush2.msra.mxu0 0.0
    %350 = vmatprep.subr.mxu0 0.0
    %351 = vmatpush2.msra.mxu0 0.0
    %352 = vmatprep.subr.mxu0 0.0
    %353 = vmatpush2.msra.mxu0 0.0
    %354 = vmatprep.subr.mxu0 0.0
    %355 = vmatpush2.msra.mxu0 0.0
    %356 = vmatprep.subr.mxu0 0.0
    %357 = vmatpush2.msra.mxu0 0.0
    %358 = vmatprep.mubr.f32.mxu0 0.0
    %359 = vmatmul.mubr.f32.gmra.mxu0 %v268
    %v360 = vpop.f32.mrf.mxu0
    %v361 = vadd.f32 %v292, %v360
    %v362 = vpop.f32.mrf.mxu0
    %363 = vmatprep.mubr.f32.mxu0 0.0
    %364 = vmatmul.mubr.f32.gmra.mxu0 %v270
    %v365 = vpop.f32.mrf.mxu0
    %v366 = vadd.f32 %v292, %v365
    %v367 = vpop.f32.mrf.mxu0
    %368 = vdwg.mxu0
    %vm369 = vcmask 64512
    %370 = vst.msk [vmem:[%s7] sm:$0xff] %vm369, %v361
    %371 = vst.msk [vmem:[%s7 + $0x8] sm:$0xff] %vm369, %v366
    // Predicated region
    $region38: #{tpu_custom_call.1} parent=1 // pred_check
      _
    $region39: #{tpu_custom_call.1} parent=1 // pred_check_branch
      %373 = sbr.rel (0) target = $region41
    $region40: #{tpu_custom_call.1} parent=1 // pred_region
      _
    $region41: #{tpu_custom_call.1} parent=1 // pred_fallthru
      _
    // Predicated region
    $region42: #{tpu_custom_call.1} parent=1 // pred_check
      _
    $region43: #{tpu_custom_call.1} parent=1 // pred_check_branch
      %375 = sbr.rel (0) target = $region45
    $region44: #{tpu_custom_call.1} parent=1 // pred_region
      _
    $region45: #{tpu_custom_call.1} parent=1 // pred_fallthru
      _
    %376 = vsyncpa [#allocation3], 1
    %377 = vsyncpa [#allocation5], 1

</llo_original>
